<compile_context>
chip_gen: v7x
topology: tpu7x:2x2x1
jax: 0.10.0
libtpu: 0.0.40
codegen_flags: <defaults>
</compile_context>

<pallas_src>
import jax
import jax.numpy as jnp
from jax.experimental import pallas as pl
from jax.experimental.pallas import tpu as pltpu


def _conv1x1_kernel(w_ref, b_ref, x_ref, o_ref):
    # w_ref: (TCo, C)    weight tile (full contraction dim resident)
    # b_ref: (TCo, 1)    f32 bias column
    # x_ref: (TB, C, TL) activation tile (lane-dense along L)
    # o_ref: (TB, TCo, TL)
    w = w_ref[...]
    # Hoist the (TCo, TL) bias broadcast out of the per-batch loop: JAX does
    # not CSE broadcast_in_dim, so leaving it inside would emit TB copies.
    bias = jnp.broadcast_to(b_ref[...], (o_ref.shape[1], o_ref.shape[2]))
    for b in range(x_ref.shape[0]):          # TB is a small static constant (<= 8)
        y = jnp.dot(w, x_ref[b], preferred_element_type=jnp.float32)   # MXU
        o_ref[b] = (y + bias).astype(o_ref.dtype)


def _hw_info():
    """Returns (vmem_capacity_bytes, num_tensorcores, is_v5e) with safe fallbacks."""
    vmem_cap = 128 << 20
    try:
        info = pltpu.get_tpu_info()
        vmem_cap = int(getattr(info, "vmem_capacity_bytes", vmem_cap))
    except Exception:
        pass
    # v7x exposes 64 MiB/TC and 2 TensorCores per chip; v5e/v6e: 128 MiB, 1 TC.
    num_tc = 2 if vmem_cap <= (64 << 20) else 1
    is_v5e = False
    try:
        kind = jax.devices()[0].device_kind.lower()
        is_v5e = ("v5e" in kind) or ("v5 lite" in kind) or ("v5litepod" in kind)
    except Exception:
        pass
    return vmem_cap, num_tc, is_v5e


def downsample1d(x, weight, bias, *, compute_dtype=None):
    """Pallas port of Downsample1d = nn.Conv1d(dim, dim, kernel_size=1, stride=1, pad=0).

    x: (B, C, L) ; weight: (C, C, 1) (PyTorch Conv1d layout) ; bias: (C,).

    compute_dtype:
        None   -> keep x's dtype (exact module semantics).
        "auto" -> cast f32 x/weight traffic to bf16 on bandwidth-starved v5e
                  (f32 MXU accumulation, output keeps x's dtype).
        dtype  -> explicit cast of x/weight (accumulation stays f32).
    NOTE: casting quantizes the *weights* as well as the activations.
    """
    B, C, L = x.shape
    out_dtype = x.dtype
    w2d = weight.reshape(C, C)                      # kernel_size == 1 -> squeeze
    b2d = bias.reshape(C, 1).astype(jnp.float32)    # f32 bias added post-accumulation

    vmem_cap, num_tc, is_v5e = _hw_info()

    if compute_dtype == "auto":
        compute_dtype = jnp.bfloat16 if (is_v5e and x.dtype == jnp.float32) else None
    if compute_dtype is not None:
        x = x.astype(compute_dtype)
        w2d = w2d.astype(compute_dtype)

    in_bytes = jnp.dtype(x.dtype).itemsize
    out_bytes = jnp.dtype(out_dtype).itemsize

    # ---- Generation-aware budgets -------------------------------------------
    vmem_target = int(0.65 * vmem_cap)              # headroom for Mosaic scratch
    big_vmem = vmem_cap >= (96 << 20)               # v5e / v6e (128 MiB per TC)
    x_budget = (6 << 20) if big_vmem else (3 << 20)  # per x block (double-buffered)
    tl_cap = 2048 if big_vmem else 1024

    # ---- C_out tiling: keep the FULL weight resident whenever it fits. ------
    # The x index_map ignores `co`, so each extra co block re-reads all of x.
    w_budget = max(vmem_target // 3, 4 << 20)
    if C <= 512 or 2 * C * C * in_bytes <= w_budget:
        tco = C
    else:
        tco = min(C, max(256, ((w_budget // (2 * C * in_bytes)) // 128) * 128))
    n_co = pl.cdiv(C, tco)
    # TODO(synk): for C >= ~4096 on v7x, add an inner C_in (contraction) grid axis
    # with an f32 VMEM accumulator instead of keeping the full C resident per block.

    # ---- L tiling: lane-dense (multiple of 128); full L when it is small. ---
    if L <= tl_cap and C * L * in_bytes <= x_budget:
        tl = L                                       # "block == full dim" exemption
    else:
        tl = max(128, min(tl_cap, ((x_budget // (C * in_bytes)) // 128) * 128))
    n_l = pl.cdiv(L, tl)

    # ---- Multi-TensorCore chips (v7x): keep >= 2 parallel grid steps. -------
    if num_tc > 1 and B == 1 and n_co == 1 and n_l == 1 and L >= 256:
        half = (L + 1) // 2
        tl = ((half + 127) // 128) * 128             # two lane-dense halves
        n_l = pl.cdiv(L, tl)

    # ---- Tiny problems: batch a few b per step to amortize per-step overhead,
    # but cap the static unroll and keep >= 2 steps when 2 TCs are available. -
    small = (B * C * L * in_bytes <= (1 << 20)) and n_l == 1 and n_co == 1
    tb = min(B, 8) if small else 1
    if num_tc > 1 and small and B > 1:
        tb = min(tb, max(1, B // 2))
    n_b = pl.cdiv(B, tb)

    # ---- VMEM budget: double-buffered x / out tiles + weight + bias + headroom.
    block_bytes = (2 * tb * C * tl * in_bytes
                   + 2 * tb * tco * tl * out_bytes
                   + 2 * tco * C * in_bytes
                   + 2 * tco * 4)
    vmem_limit = int(min(vmem_target, max(block_bytes + (4 << 20), 16 << 20)))

    cost = pl.CostEstimate(
        flops=2 * B * C * C * L,
        transcendentals=0,
        bytes_accessed=(n_co * B * C * L * in_bytes       # x (re-read once per co block)
                        + B * C * L * out_bytes           # y written once
                        + n_b * n_co * tco * C * in_bytes  # weight (constant across l)
                        + C * 4),                          # bias
    )

    return pl.pallas_call(
        _conv1x1_kernel,
        out_shape=jax.ShapeDtypeStruct((B, C, L), out_dtype),
        grid_spec=pltpu.PrefetchScalarGridSpec(
            num_scalar_prefetch=0,
            grid=(n_b, n_co, n_l),
            in_specs=[
                pl.BlockSpec((tco, C), lambda b, co, l: (co, 0)),       # weight tile
                pl.BlockSpec((tco, 1), lambda b, co, l: (co, 0)),       # bias tile
                pl.BlockSpec((tb, C, tl), lambda b, co, l: (b, 0, l)),  # x tile
            ],
            out_specs=pl.BlockSpec((tb, tco, tl), lambda b, co, l: (b, co, l)),
        ),
        compiler_params=pltpu.CompilerParams(
            # The C contraction is entirely inside the kernel, so there is no
            # cross-grid reduction: every axis is parallel (2-TC shardable on v7x).
            dimension_semantics=("parallel", "parallel", "parallel"),
            vmem_limit_bytes=vmem_limit,
        ),
        cost_estimate=cost,
    )(w2d, b2d, x)


def _ref_conv1x1(x, weight, bias):
    return (jnp.einsum("oi,bil->bol", weight[:, :, 0], x,
                       precision=jax.lax.Precision.HIGHEST)
            + bias[None, :, None])


if __name__ == "__main__":
    key = jax.random.PRNGKey(0)
    k_x, k_w, k_b, k_x2, k_w2, k_b2 = jax.random.split(key, 6)

    # ---- Small shape matching the module spec (dim = 4, seq len = 16). ------
    B, C, L = 2, 4, 16
    x = jax.random.normal(k_x, (B, C, L), dtype=jnp.float32)
    fan_in = C * 1
    bound = 1.0 / (fan_in ** 0.5)
    weight = jax.random.uniform(k_w, (C, C, 1), minval=-bound, maxval=bound,
                                dtype=jnp.float32)
    bias = jax.random.uniform(k_b, (C,), minval=-bound, maxval=bound,
                              dtype=jnp.float32)
    ref = _ref_conv1x1(x, weight, bias)

    # f32 path: exact module semantics, tight tolerance.
    out = jax.block_until_ready(downsample1d(x, weight, bias))
    assert out.shape == (B, C, L)
    assert out.dtype == x.dtype
    assert jnp.allclose(out, ref, atol=1e-5, rtol=1e-5)

    # bf16-traffic path (f32 accumulation, f32 output): looser tolerance.
    out_bf16 = jax.block_until_ready(
        downsample1d(x, weight, bias, compute_dtype=jnp.bfloat16))
    assert out_bf16.shape == (B, C, L)
    assert jnp.allclose(out_bf16, ref, atol=3e-2, rtol=3e-2)

    # "auto" path (bf16 only on v5e, otherwise identical to f32 path).
    out_auto = jax.block_until_ready(
        downsample1d(x, weight, bias, compute_dtype="auto"))
    assert jnp.allclose(out_auto, ref, atol=3e-2, rtol=3e-2)

    # ---- Moderate shape to exercise larger MXU tiles / batch unroll. --------
    B2, C2, L2 = 2, 256, 512
    x2 = jax.random.normal(k_x2, (B2, C2, L2), dtype=jnp.float32)
    bound2 = 1.0 / (C2 ** 0.5)
    weight2 = jax.random.uniform(k_w2, (C2, C2, 1), minval=-bound2, maxval=bound2,
                                 dtype=jnp.float32)
    bias2 = jax.random.uniform(k_b2, (C2,), minval=-bound2, maxval=bound2,
                               dtype=jnp.float32)
    ref2 = _ref_conv1x1(x2, weight2, bias2)
    out2 = jax.block_until_ready(downsample1d(x2, weight2, bias2))
    assert out2.shape == (B2, C2, L2)
    assert jnp.allclose(out2, ref2, atol=1e-3, rtol=1e-3)

    print("KERNEL_OK")
</pallas_src>

<mosaic_0001>
module attributes {stable_mosaic.version = 11 : i64} {
  func.func @_conv1x1_kernel(%arg0: i32, %arg1: i32, %arg2: i32, %arg3: memref<4x4xf32, #tpu.memory_space<vmem>>, %arg4: memref<4x1xf32, #tpu.memory_space<vmem>>, %arg5: memref<2x4x16xf32, #tpu.memory_space<vmem>>, %arg6: memref<2x4x16xf32, #tpu.memory_space<vmem>>) attributes {dimension_semantics = [#tpu.dimension_semantics<parallel>, #tpu.dimension_semantics<parallel>, #tpu.dimension_semantics<parallel>], iteration_bounds = array<i64: 1, 1, 1>, scalar_prefetch = 0 : i64, scratch_operands = 0 : i64, tpu.core_type = #tpu.core_type<tc>, window_params = [{transform_indices = @transform_0, window_bounds = array<i64: 4, 4>}, {transform_indices = @transform_1, window_bounds = array<i64: 4, 1>}, {transform_indices = @transform_2, window_bounds = array<i64: 2, 4, 16>}, {transform_indices = @transform_3, window_bounds = array<i64: 2, 4, 16>}]} {
    %c0 = arith.constant 0 : index
    %c0_0 = arith.constant 0 : index
    %0 = vector.load %arg3[%c0, %c0_0] : memref<4x4xf32, #tpu.memory_space<vmem>>, vector<4x4xf32>
    %c0_1 = arith.constant 0 : index
    %c0_2 = arith.constant 0 : index
    %1 = vector.load %arg4[%c0_1, %c0_2] : memref<4x1xf32, #tpu.memory_space<vmem>>, vector<4x1xf32>
    %2 = vector.shape_cast %1 : vector<4x1xf32> to vector<4x1xf32>
    %3 = vector.broadcast %2 : vector<4x1xf32> to vector<4x16xf32>
    %c0_3 = arith.constant 0 : index
    %c0_4 = arith.constant 0 : index
    %c0_5 = arith.constant 0 : index
    %4 = vector.load %arg5[%c0_3, %c0_4, %c0_5] : memref<2x4x16xf32, #tpu.memory_space<vmem>>, vector<1x4x16xf32>
    %5 = vector.shape_cast %4 : vector<1x4x16xf32> to vector<4x16xf32>
    %cst = arith.constant dense<0.000000e+00> : vector<4x16xf32>
    %6 = tpu.matmul %0, %5, %cst {dimension_numbers = #tpu.dot_dimension_numbers<[1], [0], [0], [1], [0, 0, 1, 1], [], []>} : vector<4x4xf32>, vector<4x16xf32>, vector<4x16xf32> -> vector<4x16xf32>
    %7 = arith.addf %6, %3 : vector<4x16xf32>
    %c0_6 = arith.constant 0 : index
    %c0_7 = arith.constant 0 : index
    %c0_8 = arith.constant 0 : index
    %8 = vector.load %arg6[%c0_6, %c0_7, %c0_8] : memref<2x4x16xf32, #tpu.memory_space<vmem>>, vector<1x4x16xf32>
    %9 = vector.shape_cast %8 : vector<1x4x16xf32> to vector<4x16xf32>
    %10 = vector.shape_cast %7 : vector<4x16xf32> to vector<1x4x16xf32>
    tpu.vector_store %arg6[%c0_6, %c0_7, %c0_8], %10 {strides = array<i32>} : memref<2x4x16xf32, #tpu.memory_space<vmem>>, vector<1x4x16xf32>,
    %c1 = arith.constant 1 : index
    %c0_9 = arith.constant 0 : index
    %c0_10 = arith.constant 0 : index
    %11 = vector.load %arg5[%c1, %c0_9, %c0_10] : memref<2x4x16xf32, #tpu.memory_space<vmem>>, vector<1x4x16xf32>
    %12 = vector.shape_cast %11 : vector<1x4x16xf32> to vector<4x16xf32>
    %cst_11 = arith.constant dense<0.000000e+00> : vector<4x16xf32>
    %13 = tpu.matmul %0, %12, %cst_11 {dimension_numbers = #tpu.dot_dimension_numbers<[1], [0], [0], [1], [0, 0, 1, 1], [], []>} : vector<4x4xf32>, vector<4x16xf32>, vector<4x16xf32> -> vector<4x16xf32>
    %14 = arith.addf %13, %3 : vector<4x16xf32>
    %c1_12 = arith.constant 1 : index
    %c0_13 = arith.constant 0 : index
    %c0_14 = arith.constant 0 : index
    %15 = vector.load %arg6[%c1_12, %c0_13, %c0_14] : memref<2x4x16xf32, #tpu.memory_space<vmem>>, vector<1x4x16xf32>
    %16 = vector.shape_cast %15 : vector<1x4x16xf32> to vector<4x16xf32>
    %17 = vector.shape_cast %14 : vector<4x16xf32> to vector<1x4x16xf32>
    tpu.vector_store %arg6[%c1_12, %c0_13, %c0_14], %17 {strides = array<i32>} : memref<2x4x16xf32, #tpu.memory_space<vmem>>, vector<1x4x16xf32>,
    return
  }
  func.func @transform_0(%arg0: i32, %arg1: i32, %arg2: i32) -> (i32, i32) {
    %c0_i32 = arith.constant 0 : i32
    %c0_i32_0 = arith.constant 0 : i32
    return %arg1, %c0_i32 : i32, i32
  }
  func.func @transform_1(%arg0: i32, %arg1: i32, %arg2: i32) -> (i32, i32) {
    %c0_i32 = arith.constant 0 : i32
    %c0_i32_0 = arith.constant 0 : i32
    return %arg1, %c0_i32 : i32, i32
  }
  func.func @transform_2(%arg0: i32, %arg1: i32, %arg2: i32) -> (i32, i32, i32) {
    %c0_i32 = arith.constant 0 : i32
    %c0_i32_0 = arith.constant 0 : i32
    return %arg0, %c0_i32, %arg2 : i32, i32, i32
  }
  func.func @transform_3(%arg0: i32, %arg1: i32, %arg2: i32) -> (i32, i32, i32) {
    %c0_i32 = arith.constant 0 : i32
    return %arg0, %arg1, %arg2 : i32, i32, i32
  }
}

</mosaic_0001>

<llo_original>
// kernel: tpu_custom_call.1
$region0: #{tpu_custom_call.1}
  #allocation0 [shape = 'u32[]', space=smem, size = 0x4, offset = 0x4, fixed_abs, tag = 'smem constant byte address 0x4 - core index']
  #allocation1 [shape = 'u32[144,128]{1,0:T(1,128)}', space=vmem, size = 0x12000, scoped, tag = 'internal scratch']
  %s0 = inlined_call_operand.vmem [shape: f32[4,4], index: 0, kind: input, shape index: {}]
  %s1 = inlined_call_operand.vmem [shape: f32[4,1], index: 1, kind: input, shape index: {}]
  %s2 = inlined_call_operand.vmem [shape: f32[2,4,16], index: 2, kind: input, shape index: {}]
  %s3 = inlined_call_operand.hbm [shape: f32[2,4,16], index: 3, kind: output, shape index: {}]
  %s4 = sld [smem:[#allocation0]]
  $region22: #{tpu_custom_call.1} parent=0
    _
  %s6 = ssub.s32 1, %s4
  %s7 = scalar_select 0, %s6, %s4
  $region1: #{tpu_custom_call.1} parent=0
    #allocation2 [shape = 'u8[4096]{0}', space=vmem, size = 0x1000, scoped, tag = 'output window, operand 0, single buffered']
    #allocation3 [shape = 's32[1]{0}', space=sflag, size = 0x4, scoped, tag = 'scoped memory for tpu_custom_call.1']
    %8 = vsyncpa [#allocation3], 0
    // Predicated region
    $region2: #{tpu_custom_call.1} parent=1 // pred_check
      _
    $region3: #{tpu_custom_call.1} parent=1 // pred_check_branch
      %10 = sbr.rel (0) target = $region5
    $region4: #{tpu_custom_call.1} parent=1 // pred_region
      _
    $region5: #{tpu_custom_call.1} parent=1 // pred_fallthru
      _
    // Predicated region
    $region6: #{tpu_custom_call.1} parent=1 // pred_check
      _
    $region7: #{tpu_custom_call.1} parent=1 // pred_check_branch
      %12 = sbr.rel (0) target = $region9
    $region8: #{tpu_custom_call.1} parent=1 // pred_region
      _
    $region9: #{tpu_custom_call.1} parent=1 // pred_fallthru
      _
    // Predicated region
    $region10: #{tpu_custom_call.1} parent=1 // pred_check
      _
    $region11: #{tpu_custom_call.1} parent=1 // pred_check_branch
      %14 = sbr.rel (0) target = $region13
    $region12: #{tpu_custom_call.1} parent=1 // pred_region
      _
    $region13: #{tpu_custom_call.1} parent=1 // pred_fallthru
      _
    %v15 = vld [vmem:[%s0] sm:$0xf]
    %v16 = vld [vmem:[%s1] sm:$0xf]
    %18 = vset.pattern.permute.xlu0 0
    %19 = vperm.xlu0 %18, %v16
    %v20 = vpop.permute.xlu0 %19
    %v22 = vld [vmem:[%s2] sm:$0xf]
    %vm23 = vcmask 31744
    %v25 = vsel %vm23, %v15, 0
    %vm27 = vcmask 1043456
    %v29 = vsel %vm27, %v22, 0
    %31 = vmatprep.subr.mxu0 0.0
    %32 = vmatpush1.msra.mxu0 %v29
    %33 = vmatprep.subr.mxu0 0.0
    %34 = vmatpush1.msra.mxu0 0.0
    %35 = vmatprep.subr.mxu0 0.0
    %36 = vmatpush1.msra.mxu0 0.0
    %37 = vmatprep.subr.mxu0 0.0
    %38 = vmatpush1.msra.mxu0 0.0
    %39 = vmatprep.subr.mxu0 0.0
    %40 = vmatpush1.msra.mxu0 0.0
    %41 = vmatprep.subr.mxu0 0.0
    %42 = vmatpush1.msra.mxu0 0.0
    %43 = vmatprep.subr.mxu0 0.0
    %44 = vmatpush1.msra.mxu0 0.0
    %45 = vmatprep.subr.mxu0 0.0
    %46 = vmatpush1.msra.mxu0 0.0
    %47 = vmatprep.subr.mxu0 0.0
    %48 = vmatpush1.msra.mxu0 0.0
    %49 = vmatprep.subr.mxu0 0.0
    %50 = vmatpush1.msra.mxu0 0.0
    %51 = vmatprep.subr.mxu0 0.0
    %52 = vmatpush1.msra.mxu0 0.0
    %53 = vmatprep.subr.mxu0 0.0
    %54 = vmatpush1.msra.mxu0 0.0
    %55 = vmatprep.subr.mxu0 0.0
    %56 = vmatpush1.msra.mxu0 0.0
    %57 = vmatprep.subr.mxu0 0.0
    %58 = vmatpush1.msra.mxu0 0.0
    %59 = vmatprep.subr.mxu0 0.0
    %60 = vmatpush1.msra.mxu0 0.0
    %61 = vmatprep.subr.mxu0 0.0
    %62 = vmatpush1.msra.mxu0 0.0
    %63 = vmatprep.subr.mxu0 0.0
    %64 = vmatpush1.msra.mxu0 0.0
    %65 = vmatprep.subr.mxu0 0.0
    %66 = vmatpush1.msra.mxu0 0.0
    %67 = vmatprep.subr.mxu0 0.0
    %68 = vmatpush1.msra.mxu0 0.0
    %69 = vmatprep.subr.mxu0 0.0
    %70 = vmatpush1.msra.mxu0 0.0
    %71 = vmatprep.subr.mxu0 0.0
    %72 = vmatpush1.msra.mxu0 0.0
    %73 = vmatprep.subr.mxu0 0.0
    %74 = vmatpush1.msra.mxu0 0.0
    %75 = vmatprep.subr.mxu0 0.0
    %76 = vmatpush1.msra.mxu0 0.0
    %77 = vmatprep.subr.mxu0 0.0
    %78 = vmatpush1.msra.mxu0 0.0
    %79 = vmatprep.subr.mxu0 0.0
    %80 = vmatpush1.msra.mxu0 0.0
    %81 = vmatprep.subr.mxu0 0.0
    %82 = vmatpush1.msra.mxu0 0.0
    %83 = vmatprep.subr.mxu0 0.0
    %84 = vmatpush1.msra.mxu0 0.0
    %85 = vmatprep.subr.mxu0 0.0
    %86 = vmatpush1.msra.mxu0 0.0
    %87 = vmatprep.subr.mxu0 0.0
    %88 = vmatpush1.msra.mxu0 0.0
    %89 = vmatprep.subr.mxu0 0.0
    %90 = vmatpush1.msra.mxu0 0.0
    %91 = vmatprep.subr.mxu0 0.0
    %92 = vmatpush1.msra.mxu0 0.0
    %93 = vmatprep.subr.mxu0 0.0
    %94 = vmatpush1.msra.mxu0 0.0
    %95 = vmatprep.mubr.f32.mxu0 0.0
    %96 = vmatmul.mubr.f32.gmra.mrb[0].mxu0 %v25
    %v97 = vpop.f32.mrb[0].mxu0
    %v98 = vadd.f32 %v20, %v97
    %v99 = vpop.f32.mrb[0].mxu0
    %100 = vdwg.mxu0
    %vm101 = vcmask 125952
    %102 = vst.msk [vmem:[#allocation2] sm:$0xf] %vm101, %v98
    %s103 = scalar_lea.vmem %s2, 4
    %v104 = vld [vmem:[%s103] sm:$0xf]
    %v106 = vsel %vm27, %v104, 0
    %108 = vmatprep.subr.mxu0 0.0
    %109 = vmatpush1.msra.mxu0 %v106
    %110 = vmatprep.subr.mxu0 0.0
    %111 = vmatpush1.msra.mxu0 0.0
    %112 = vmatprep.subr.mxu0 0.0
    %113 = vmatpush1.msra.mxu0 0.0
    %114 = vmatprep.subr.mxu0 0.0
    %115 = vmatpush1.msra.mxu0 0.0
    %116 = vmatprep.subr.mxu0 0.0
    %117 = vmatpush1.msra.mxu0 0.0
    %118 = vmatprep.subr.mxu0 0.0
    %119 = vmatpush1.msra.mxu0 0.0
    %120 = vmatprep.subr.mxu0 0.0
    %121 = vmatpush1.msra.mxu0 0.0
    %122 = vmatprep.subr.mxu0 0.0
    %123 = vmatpush1.msra.mxu0 0.0
    %124 = vmatprep.subr.mxu0 0.0
    %125 = vmatpush1.msra.mxu0 0.0
    %126 = vmatprep.subr.mxu0 0.0
    %127 = vmatpush1.msra.mxu0 0.0
    %128 = vmatprep.subr.mxu0 0.0
    %129 = vmatpush1.msra.mxu0 0.0
    %130 = vmatprep.subr.mxu0 0.0
    %131 = vmatpush1.msra.mxu0 0.0
    %132 = vmatprep.subr.mxu0 0.0
    %133 = vmatpush1.msra.mxu0 0.0
    %134 = vmatprep.subr.mxu0 0.0
    %135 = vmatpush1.msra.mxu0 0.0
    %136 = vmatprep.subr.mxu0 0.0
    %137 = vmatpush1.msra.mxu0 0.0
    %138 = vmatprep.subr.mxu0 0.0
    %139 = vmatpush1.msra.mxu0 0.0
    %140 = vmatprep.subr.mxu0 0.0
    %141 = vmatpush1.msra.mxu0 0.0
    %142 = vmatprep.subr.mxu0 0.0
    %143 = vmatpush1.msra.mxu0 0.0
    %144 = vmatprep.subr.mxu0 0.0
    %145 = vmatpush1.msra.mxu0 0.0
    %146 = vmatprep.subr.mxu0 0.0
    %147 = vmatpush1.msra.mxu0 0.0
    %148 = vmatprep.subr.mxu0 0.0
    %149 = vmatpush1.msra.mxu0 0.0
    %150 = vmatprep.subr.mxu0 0.0
    %151 = vmatpush1.msra.mxu0 0.0
    %152 = vmatprep.subr.mxu0 0.0
    %153 = vmatpush1.msra.mxu0 0.0
    %154 = vmatprep.subr.mxu0 0.0
    %155 = vmatpush1.msra.mxu0 0.0
    %156 = vmatprep.subr.mxu0 0.0
    %157 = vmatpush1.msra.mxu0 0.0
    %158 = vmatprep.subr.mxu0 0.0
    %159 = vmatpush1.msra.mxu0 0.0
    %160 = vmatprep.subr.mxu0 0.0
    %161 = vmatpush1.msra.mxu0 0.0
    %162 = vmatprep.subr.mxu0 0.0
    %163 = vmatpush1.msra.mxu0 0.0
    %164 = vmatprep.subr.mxu0 0.0
    %165 = vmatpush1.msra.mxu0 0.0
    %166 = vmatprep.subr.mxu0 0.0
    %167 = vmatpush1.msra.mxu0 0.0
    %168 = vmatprep.subr.mxu0 0.0
    %169 = vmatpush1.msra.mxu0 0.0
    %170 = vmatprep.subr.mxu0 0.0
    %171 = vmatpush1.msra.mxu0 0.0
    %172 = vmatprep.mubr.f32.mxu0 0.0
    %173 = vmatmul.mubr.f32.gmra.mrb[0].mxu0 %v25
    %v174 = vpop.f32.mrb[0].mxu0
    %v175 = vadd.f32 %v20, %v174
    %v176 = vpop.f32.mrb[0].mxu0
    %177 = vdwg.mxu0
    %s178 = scalar_lea.vmem [#allocation2], 4
    %179 = vst.msk [vmem:[%s178] sm:$0xf] %vm101, %v175
    // Predicated region
    $region14: #{tpu_custom_call.1} parent=1 // pred_check
      _
    $region15: #{tpu_custom_call.1} parent=1 // pred_check_branch
      %181 = sbr.rel (0) target = $region17
    $region16: #{tpu_custom_call.1} parent=1 // pred_region
      %s183 = ssub.s32 128, 128
      %184 = vsyncadd [#allocation3], %s183
      %s185 = sshll.u32 [#allocation2], 4
      %s186 = int_to_ptr.vmem [resolvable:$true] %s185
      %191 = dma.vmem_to_hbm [thread:$0]  %s186, 128, %s3, [#allocation3], 64, 64, 4
    $region17: #{tpu_custom_call.1} parent=1 // pred_fallthru
      _
    // Predicated region
    $region18: #{tpu_custom_call.1} parent=1 // pred_check
      _
    $region19: #{tpu_custom_call.1} parent=1 // pred_check_branch
      %193 = sbr.rel (0) target = $region21
    $region20: #{tpu_custom_call.1} parent=1 // pred_region
      %194 = dma.done [#allocation3], 128
    $region21: #{tpu_custom_call.1} parent=1 // pred_fallthru
      _
    %195 = vsyncpa [#allocation3], 1

</llo_original>
